<compile_context>
chip_gen: v7x
topology: tpu7x:2x2x1
jax: 0.10.0
libtpu: 0.0.40
codegen_flags: <defaults>
</compile_context>

<pallas_src>
import functools

import numpy as np
import jax
import jax.numpy as jnp
from jax import lax
from jax.experimental import pallas as pl
from jax.experimental.pallas import tpu as pltpu

# TODO(synk): margin `m` is undefined in the reference seminal_triplet_loss;
# fixed to 0.5 here (surface as a parameter if the true value is known).
MARGIN = 0.5


def _round_up(x, m):
    return ((x + m - 1) // m) * m


# ---------------------------------------------------------------------------
# Kernel 1: per-sample CE, row max, row argmax, minority-class logit columns
# ---------------------------------------------------------------------------
def _ce_max_kernel(min_cols, score_ref, label_ref, out_ref):
    x = score_ref[...].astype(jnp.float32)           # (TN, C) cast in-kernel
    lab = label_ref[...]                              # (TN, 1) int32
    tn, c = x.shape
    col = lax.broadcasted_iota(jnp.int32, (tn, c), 1)

    # row max / first-argmax (like torch.max)
    m = jnp.max(x, axis=1, keepdims=True)
    amax = jnp.min(jnp.where(x == m, col, c), axis=1, keepdims=True)

    # numerically-stable log-sum-exp cross entropy
    lse = m + jnp.log(jnp.sum(jnp.exp(x - m), axis=1, keepdims=True))
    picked = jnp.sum(jnp.where(col == lab, x, 0.0), axis=1, keepdims=True)

    # combined output block (one writeback DMA per tile)
    out_ref[:, 0:1] = lse - picked                    # per-sample CE
    out_ref[:, 1:2] = m                               # max prediction
    out_ref[:, 2:3] = amax.astype(jnp.float32)        # argmax (exact in f32)
    for i, cc in enumerate(min_cols):                 # minority logit columns
        out_ref[:, 3 + i:4 + i] = x[:, cc:cc + 1]


def ce_max_argmax(cls_score, label, min_classes):
    n, c = cls_score.shape
    num_min = len(min_classes)
    w = 3 + num_min

    # Row tile sized so double-buffered input (~2 x TN x C bytes) stays well
    # under the 32 MiB scoped VMEM limit (v7x's 64 MiB physical included).
    row_bytes = max(1, c * np.dtype(cls_score.dtype).itemsize)
    tn = max(8, min(512, ((4 * 1024 * 1024) // row_bytes) // 8 * 8))
    tn = min(tn, _round_up(n, 8))
    grid = (pl.cdiv(n, tn),)

    label2 = label.reshape(n, 1).astype(jnp.int32)
    out = pl.pallas_call(
        functools.partial(_ce_max_kernel, tuple(min_classes)),
        out_shape=jax.ShapeDtypeStruct((n, w), jnp.float32),
        grid=grid,
        in_specs=[pl.BlockSpec((tn, c), lambda i: (i, 0)),
                  pl.BlockSpec((tn, 1), lambda i: (i, 0))],
        out_specs=pl.BlockSpec((tn, w), lambda i: (i, 0)),
        compiler_params=pltpu.CompilerParams(
            dimension_semantics=("parallel",)),
    )(cls_score, label2)                               # native dtype into kernel

    per_loss = out[:, 0]
    max_pred = out[:, 1]
    max_lab = out[:, 2].astype(jnp.int32)
    anc_cols = out[:, 3:]                              # cls_score[:, min_classes]
    return per_loss, max_pred, max_lab, anc_cols


# ---------------------------------------------------------------------------
# Kernel 2: fused seminal triplet ranking hinge (no HBM triplet tensors)
# ---------------------------------------------------------------------------
def _triplet_kernel(num_min, k_pos, anc_ref, neg_ref, pos_v_ref, pos_m_ref,
                    out_ref):
    total = jnp.zeros((), jnp.float32)
    for ci in range(num_min):                          # static, small
        ablk = anc_ref[ci]                             # (TA, 2) value|valid
        a, av = ablk[:, 0:1], ablk[:, 1:2]             # (TA, 1) each
        nblk = neg_ref[ci]                             # (2, KL) value|valid
        neg, nv = nblk[0:1, :], nblk[1:2, :]           # (1, KL) each
        neg_d = jnp.abs(a - neg)                       # (TA, KL), computed once

        acc = jnp.zeros(neg_d.shape, jnp.float32)
        for j in range(k_pos):                         # static unroll (k small)
            p = pos_v_ref[ci, j]                       # hard-positive scalar (SMEM)
            pv = pos_m_ref[ci, j]                      # its validity (SMEM)
            pos_d = jnp.abs(a - p)                     # (TA, 1)
            acc = acc + pv * jnp.maximum(MARGIN + neg_d - pos_d, 0.0)

        total = total + jnp.sum((av * nv) * acc)       # mask anchors x negatives
    out_ref[...] = total.reshape(1, 1, 1)


def triplet_hinge_sum(anc_vals, anc_valid, neg_vals, neg_valid,
                      pos_vals, pos_valid, k):
    num_min, n = anc_vals.shape
    ta = min(128, _round_up(n, 8))                     # anchor tile (sublane axis)
    n_pad = _round_up(n, ta)
    kl = _round_up(max(k, 1), 128)                     # lane-pad hard negatives
    grid = (n_pad // ta,)

    # pack (value, valid) so each operand is one DMA per grid step
    anc = jnp.stack(                                   # (num_min, n_pad, 2)
        [jnp.pad(anc_vals.astype(jnp.float32), ((0, 0), (0, n_pad - n))),
         jnp.pad(anc_valid.astype(jnp.float32), ((0, 0), (0, n_pad - n)))],
        axis=-1)
    neg = jnp.stack(                                   # (num_min, 2, kl)
        [jnp.pad(neg_vals.astype(jnp.float32), ((0, 0), (0, kl - k))),
         jnp.pad(neg_valid.astype(jnp.float32), ((0, 0), (0, kl - k)))],
        axis=1)

    anc_spec = pl.BlockSpec((num_min, ta, 2), lambda i: (0, i, 0))
    neg_spec = pl.BlockSpec((num_min, 2, kl), lambda i: (0, 0, 0))
    smem_spec = pl.BlockSpec(memory_space=pltpu.MemorySpace.SMEM)

    partials = pl.pallas_call(
        functools.partial(_triplet_kernel, num_min, k),
        out_shape=jax.ShapeDtypeStruct((grid[0], 1, 1), jnp.float32),
        grid=grid,
        in_specs=[anc_spec, neg_spec, smem_spec, smem_spec],
        out_specs=pl.BlockSpec((1, 1, 1), lambda i: (i, 0, 0)),
        compiler_params=pltpu.CompilerParams(
            dimension_semantics=("parallel",)),
    )(anc, neg, pos_vals.astype(jnp.float32), pos_valid.astype(jnp.float32))
    return jnp.sum(partials)


# ---------------------------------------------------------------------------
# CRLLoss forward (use_sigmoid=False, use_soft=False, reduction='mean',
# class_weight=None, weight=None, avg_factor=None)
# ---------------------------------------------------------------------------
def crl_loss(cls_score, label, *, min_classes, k, loss_weight=1.0):
    n, num_classes = cls_score.shape
    label = label.astype(jnp.int32)
    min_classes = tuple(int(c) for c in min_classes)

    per_loss, max_pred, max_lab, anc_cols = ce_max_argmax(
        cls_score, label, min_classes)

    # minority-label mask (torch.isin(label, min_classes))
    is_min = jnp.isin(label, jnp.asarray(min_classes, dtype=jnp.int32))

    # majority cross-entropy, reduction='mean' over majority samples
    maj_mask = ~is_min
    maj_cnt = jnp.sum(maj_mask.astype(jnp.float32))
    loss_mjr = loss_weight * jnp.sum(
        jnp.where(maj_mask, per_loss, 0.0)) / maj_cnt

    # hard-sample mining per minority class (static shapes, validity masks)
    anc_vals_l, anc_valid_l = [], []
    neg_vals_l, neg_valid_l = [], []
    pos_vals_l, pos_valid_l = [], []
    dim = jnp.zeros((), jnp.float32)
    for ci, c in enumerate(min_classes):
        score_c = anc_cols[:, ci]

        # hard negatives: argmax == c and label != c, top-k by max prediction
        neg_cand = (max_lab == c) & (label != c)
        neg_key = jnp.where(neg_cand, max_pred, -jnp.inf)
        neg_topv, neg_idx = jax.lax.top_k(neg_key, k)
        neg_valid = neg_topv > -jnp.inf
        neg_vals = jnp.where(neg_valid, score_c[neg_idx], 0.0)
        has_neg = jnp.any(neg_cand)
        fb_neg_vals = jnp.zeros((k,), jnp.float32).at[0].set(1.0)  # one_hot(c)[c]
        fb_valid = jnp.zeros((k,), bool).at[0].set(True)
        neg_vals = jnp.where(has_neg, neg_vals, fb_neg_vals)
        neg_valid = jnp.where(has_neg, neg_valid, fb_valid)

        # hard positives: label == c, bottom-k by prediction at class c
        pos_cand = label == c
        pos_key = jnp.where(pos_cand, -score_c, -jnp.inf)
        pos_topv, pos_idx = jax.lax.top_k(pos_key, k)
        pos_valid = pos_topv > -jnp.inf
        pos_vals = jnp.where(pos_valid, score_c[pos_idx], 0.0)
        has_pos = jnp.any(pos_cand)
        fb_pos_vals = jnp.zeros((k,), jnp.float32)                 # (1-one_hot(c))[c]
        pos_vals = jnp.where(has_pos, pos_vals, fb_pos_vals)
        pos_valid = jnp.where(has_pos, pos_valid, fb_valid)

        anc_valid_f = pos_cand.astype(jnp.float32)
        neg_valid_f = neg_valid.astype(jnp.float32)
        pos_valid_f = pos_valid.astype(jnp.float32)

        anc_vals_l.append(score_c)
        anc_valid_l.append(anc_valid_f)
        neg_vals_l.append(neg_vals)
        neg_valid_l.append(neg_valid_f)
        pos_vals_l.append(pos_vals)
        pos_valid_l.append(pos_valid_f)

        dim = dim + (jnp.sum(anc_valid_f)
                     * jnp.sum(pos_valid_f)
                     * jnp.sum(neg_valid_f))

    hinge_sum = triplet_hinge_sum(
        jnp.stack(anc_vals_l), jnp.stack(anc_valid_l),
        jnp.stack(neg_vals_l), jnp.stack(neg_valid_l),
        jnp.stack(pos_vals_l), jnp.stack(pos_valid_l), k)

    loss_mnr = jnp.where(dim > 0, hinge_sum / dim, 0.0)
    return loss_mjr + loss_mnr


if __name__ == "__main__":
    key = jax.random.PRNGKey(0)
    k1, k2 = jax.random.split(key)

    N, C = 8, 4
    cls_score = jax.random.normal(k1, (N, C), dtype=jnp.float32)
    label = jax.random.randint(k2, (N,), 0, C, dtype=jnp.int32)
    # guarantee both majority and minority samples are present
    label = label.at[0].set(0).at[1].set(1).at[2].set(2).at[3].set(3)

    min_classes = (1, 3)
    k = 2

    loss = crl_loss(cls_score, label, min_classes=min_classes, k=k,
                    loss_weight=1.0)
    loss = jax.block_until_ready(loss)
    assert jnp.isfinite(loss), f"non-finite loss: {loss}"
    print("KERNEL_OK")
</pallas_src>

<mosaic_0001>
module attributes {stable_mosaic.version = 11 : i64} {
  func.func @_ce_max_kernel(%arg0: i32, %arg1: memref<8x4xf32, #tpu.memory_space<vmem>>, %arg2: memref<8x1xi32, #tpu.memory_space<vmem>>, %arg3: memref<8x5xf32, #tpu.memory_space<vmem>>) attributes {dimension_semantics = [#tpu.dimension_semantics<parallel>], iteration_bounds = array<i64: 1>, scalar_prefetch = 0 : i64, scratch_operands = 0 : i64, tpu.core_type = #tpu.core_type<tc>, window_params = [{transform_indices = @transform_0, window_bounds = array<i64: 8, 4>}, {transform_indices = @transform_1, window_bounds = array<i64: 8, 1>}, {transform_indices = @transform_2, window_bounds = array<i64: 8, 5>}]} {
    %c0 = arith.constant 0 : index
    %c0_0 = arith.constant 0 : index
    %0 = vector.load %arg1[%c0, %c0_0] : memref<8x4xf32, #tpu.memory_space<vmem>>, vector<8x4xf32>
    %c0_1 = arith.constant 0 : index
    %c0_2 = arith.constant 0 : index
    %1 = vector.load %arg2[%c0_1, %c0_2] : memref<8x1xi32, #tpu.memory_space<vmem>>, vector<8x1xi32>
    %2 = tpu.iota {dimensions = array<i32: 1>} : vector<8x4xi32>
    %cst = arith.constant dense<0xFF800000> : vector<8xf32>
    %3 = vector.multi_reduction <maximumf>, %0, %cst [1] : vector<8x4xf32> to vector<8xf32>
    %4 = vector.shape_cast %3 : vector<8xf32> to vector<8x1xf32>
    %5 = vector.broadcast %4 : vector<8x1xf32> to vector<8x4xf32>
    %6 = arith.cmpf oeq, %0, %5 : vector<8x4xf32>
    %c4_i32 = arith.constant 4 : i32
    %7 = vector.broadcast %c4_i32 : i32 to vector<8x4xi32>
    %8 = arith.select %6, %2, %7 : vector<8x4xi1>, vector<8x4xi32>
    %cst_3 = arith.constant dense<2147483647> : vector<8xi32>
    %9 = vector.multi_reduction <minsi>, %8, %cst_3 [1] : vector<8x4xi32> to vector<8xi32>
    %10 = vector.shape_cast %9 : vector<8xi32> to vector<8x1xi32>
    %11 = vector.broadcast %4 : vector<8x1xf32> to vector<8x4xf32>
    %12 = arith.subf %0, %11 : vector<8x4xf32>
    %13 = math.exp %12 : vector<8x4xf32>
    %cst_4 = arith.constant dense<0.000000e+00> : vector<8xf32>
    %14 = vector.multi_reduction <add>, %13, %cst_4 [1] : vector<8x4xf32> to vector<8xf32>
    %15 = vector.shape_cast %14 : vector<8xf32> to vector<8x1xf32>
    %16 = math.log %15 : vector<8x1xf32>
    %17 = arith.addf %4, %16 : vector<8x1xf32>
    %18 = vector.broadcast %1 : vector<8x1xi32> to vector<8x4xi32>
    %19 = arith.cmpi eq, %2, %18 : vector<8x4xi32>
    %cst_5 = arith.constant 0.000000e+00 : f32
    %20 = vector.broadcast %cst_5 : f32 to vector<8x4xf32>
    %21 = arith.select %19, %0, %20 : vector<8x4xi1>, vector<8x4xf32>
    %cst_6 = arith.constant dense<0.000000e+00> : vector<8xf32>
    %22 = vector.multi_reduction <add>, %21, %cst_6 [1] : vector<8x4xf32> to vector<8xf32>
    %23 = vector.shape_cast %22 : vector<8xf32> to vector<8x1xf32>
    %24 = arith.subf %17, %23 : vector<8x1xf32>
    %c0_7 = arith.constant 0 : index
    %c0_8 = arith.constant 0 : index
    %25 = vector.load %arg3[%c0_7, %c0_8] : memref<8x5xf32, #tpu.memory_space<vmem>>, vector<8x1xf32>
    tpu.vector_store %arg3[%c0_7, %c0_8], %24 {strides = array<i32>} : memref<8x5xf32, #tpu.memory_space<vmem>>, vector<8x1xf32>,
    %c0_9 = arith.constant 0 : index
    %c1 = arith.constant 1 : index
    %26 = vector.load %arg3[%c0_9, %c1] : memref<8x5xf32, #tpu.memory_space<vmem>>, vector<8x1xf32>
    tpu.vector_store %arg3[%c0_9, %c1], %4 {strides = array<i32>} : memref<8x5xf32, #tpu.memory_space<vmem>>, vector<8x1xf32>,
    %27 = arith.sitofp %10 : vector<8x1xi32> to vector<8x1xf32>
    %c0_10 = arith.constant 0 : index
    %c2 = arith.constant 2 : index
    %28 = vector.load %arg3[%c0_10, %c2] : memref<8x5xf32, #tpu.memory_space<vmem>>, vector<8x1xf32>
    tpu.vector_store %arg3[%c0_10, %c2], %27 {strides = array<i32>} : memref<8x5xf32, #tpu.memory_space<vmem>>, vector<8x1xf32>,
    %29 = vector.extract_strided_slice %0 {offsets = [0, 1], sizes = [8, 1], strides = [1, 1]} : vector<8x4xf32> to vector<8x1xf32>
    %c0_11 = arith.constant 0 : index
    %c3 = arith.constant 3 : index
    %30 = vector.load %arg3[%c0_11, %c3] : memref<8x5xf32, #tpu.memory_space<vmem>>, vector<8x1xf32>
    tpu.vector_store %arg3[%c0_11, %c3], %29 {strides = array<i32>} : memref<8x5xf32, #tpu.memory_space<vmem>>, vector<8x1xf32>,
    %31 = vector.extract_strided_slice %0 {offsets = [0, 3], sizes = [8, 1], strides = [1, 1]} : vector<8x4xf32> to vector<8x1xf32>
    %c0_12 = arith.constant 0 : index
    %c4 = arith.constant 4 : index
    %32 = vector.load %arg3[%c0_12, %c4] : memref<8x5xf32, #tpu.memory_space<vmem>>, vector<8x1xf32>
    tpu.vector_store %arg3[%c0_12, %c4], %31 {strides = array<i32>} : memref<8x5xf32, #tpu.memory_space<vmem>>, vector<8x1xf32>,
    return
  }
  func.func @transform_0(%arg0: i32) -> (i32, i32) {
    %c0_i32 = arith.constant 0 : i32
    %c0_i32_0 = arith.constant 0 : i32
    return %arg0, %c0_i32 : i32, i32
  }
  func.func @transform_1(%arg0: i32) -> (i32, i32) {
    %c0_i32 = arith.constant 0 : i32
    %c0_i32_0 = arith.constant 0 : i32
    return %arg0, %c0_i32 : i32, i32
  }
  func.func @transform_2(%arg0: i32) -> (i32, i32) {
    %c0_i32 = arith.constant 0 : i32
    %c0_i32_0 = arith.constant 0 : i32
    return %arg0, %c0_i32 : i32, i32
  }
}

</mosaic_0001>

<llo_original>
// kernel: tpu_custom_call.1
$region0: #{tpu_custom_call.1}
  #allocation0 [shape = 'u32[]', space=smem, size = 0x4, offset = 0x4, fixed_abs, tag = 'smem constant byte address 0x4 - core index']
  #allocation1 [shape = 'u32[144,128]{1,0:T(1,128)}', space=vmem, size = 0x12000, scoped, tag = 'internal scratch']
  %s0 = inlined_call_operand.vmem [shape: f32[8,4], index: 0, kind: input, shape index: {}]
  %s1 = inlined_call_operand.vmem [shape: s32[8,1], index: 1, kind: input, shape index: {}]
  %s2 = inlined_call_operand.hbm [shape: f32[8,5], index: 2, kind: output, shape index: {}]
  %s3 = sld [smem:[#allocation0]]
  $region18: #{tpu_custom_call.1} parent=0
    _
  %s5 = ssub.s32 1, %s3
  %s6 = scalar_select 0, %s5, %s3
  $region1: #{tpu_custom_call.1} parent=0
    #allocation2 [shape = 'u8[4096]{0}', space=vmem, size = 0x1000, scoped, tag = 'output window, operand 0, single buffered']
    #allocation3 [shape = 's32[1]{0}', space=sflag, size = 0x4, scoped, tag = 'scoped memory for tpu_custom_call.1']
    %7 = vsyncpa [#allocation3], 0
    // Predicated region
    $region2: #{tpu_custom_call.1} parent=1 // pred_check
      _
    $region3: #{tpu_custom_call.1} parent=1 // pred_check_branch
      %9 = sbr.rel (0) target = $region5
    $region4: #{tpu_custom_call.1} parent=1 // pred_region
      _
    $region5: #{tpu_custom_call.1} parent=1 // pred_fallthru
      _
    // Predicated region
    $region6: #{tpu_custom_call.1} parent=1 // pred_check
      _
    $region7: #{tpu_custom_call.1} parent=1 // pred_check_branch
      %11 = sbr.rel (0) target = $region9
    $region8: #{tpu_custom_call.1} parent=1 // pred_region
      _
    $region9: #{tpu_custom_call.1} parent=1 // pred_fallthru
      _
    %v12 = vld [vmem:[%s0] sm:$0xff]
    %v13 = vld [vmem:[%s1] sm:$0xff]
    %v14 = vlaneseq
    %v15 = vand.u32 %v14, 127
    %vm16 = vcmask 31744
    %v17 = vsel %vm16, %v12, -inf
    %18 = vmax.xlane.f32.xlu0 %v17
    %v19 = vpop.xlane.xlu0 %18
    %vm20 = vcmp.eq.f32.partialorder %v12, %v19
    %v21 = vsel %vm20, %v15, 4
    %v22 = vsel %vm16, %v21, 2147483647
    %v23 = vand.u32 %v22, 65535
    %v24 = vshra.s32 %v22, 16
    %v25 = vcvt.s32.f32 %v23
    %v26 = vcvt.s32.f32 %v24
    %27 = vmin.xlane.f32.xlu0 %v26
    %v28 = vpop.xlane.xlu0 %27
    %vm29 = vcmp.eq.f32.partialorder %v26, %v28
    %v30 = vsel %vm29, %v25, inf
    %31 = vmin.xlane.f32.xlu0 %v30
    %v32 = vpop.xlane.xlu0 %31
    %v33 = vcvt.f32.s32 %v32
    %v34 = vcvt.f32.s32 %v28
    %v35 = vshll.u32 %v34, 16
    %v36 = vadd.s32 %v35, %v33
    %v37 = vsub.f32 %v12, %v19
    %v38 = vmul.f32 %v37, 1.442695
    %v39 = vpow.pop %v38
    %v40 = vsel %vm16, %v39, 0.0
    %41 = vadd.xlane.f32.xlu0 %v40
    %v42 = vpop.xlane.xlu0 %41
    %v43 = vlog2.pop %v42
    %v44 = vmul.f32 %v43, 0.6931472
    %v45 = vadd.f32 %v19, %v44
    %46 = vset.pattern.permute.xlu0 0
    %47 = vperm.xlu0 %46, %v13
    %v48 = vpop.permute.xlu0 %47
    %vm49 = vcmp.eq.s32.totalorder %v15, %v48
    %v50 = vsel %vm49, %v12, 0.0
    %v51 = vsel %vm16, %v50, 0.0
    %52 = vadd.xlane.f32.xlu0 %v51
    %v53 = vpop.xlane.xlu0 %52
    %v54 = vsub.f32 %v45, %v53
    %vm55 = vcmask 7168
    %56 = vst.msk [vmem:[#allocation2] sm:$0xff] %vm55, %v54
    %vm57 = vcmask 15368
    %58 = vst.msk [vmem:[#allocation2] sm:$0xff] %vm57, %v19
    %v59 = vcvt.s32.f32 %v36
    %vm60 = vcmask 23568
    %61 = vst.msk [vmem:[#allocation2] sm:$0xff] %vm60, %v59
    %63 = vrot.lane.b32.xlu0 %v12, 2
    %v64 = vpop.permute.xlu0 %63
    %vm66 = vcmask 31768
    %67 = vst.msk [vmem:[#allocation2] sm:$0xff] %vm66, %v64
    %68 = vrot.lane.b32.xlu0 %v12, 1
    %v69 = vpop.permute.xlu0 %68
    %vm71 = vcmask 39968
    %72 = vst.msk [vmem:[#allocation2] sm:$0xff] %vm71, %v69
    // Predicated region
    $region10: #{tpu_custom_call.1} parent=1 // pred_check
      _
    $region11: #{tpu_custom_call.1} parent=1 // pred_check_branch
      %74 = sbr.rel (0) target = $region13
    $region12: #{tpu_custom_call.1} parent=1 // pred_region
      %s76 = ssub.s32 128, 128
      %77 = vsyncadd [#allocation3], %s76
      %s79 = sshll.u32 [#allocation2], 4
      %s80 = int_to_ptr.vmem [resolvable:$true] %s79
      %82 = dma.vmem_to_hbm [thread:$0]  %s80, 128, %s2, [#allocation3]
    $region13: #{tpu_custom_call.1} parent=1 // pred_fallthru
      _
    // Predicated region
    $region14: #{tpu_custom_call.1} parent=1 // pred_check
      _
    $region15: #{tpu_custom_call.1} parent=1 // pred_check_branch
      %84 = sbr.rel (0) target = $region17
    $region16: #{tpu_custom_call.1} parent=1 // pred_region
      %85 = dma.done [#allocation3], 128
    $region17: #{tpu_custom_call.1} parent=1 // pred_fallthru
      _
    %86 = vsyncpa [#allocation3], 1

</llo_original>
